<compile_context>
chip_gen: v5e
topology: v5e:2x2
jax: 0.10.0
libtpu: 0.0.40
codegen_flags: <defaults>
</compile_context>

<pallas_src>
import functools

import jax
import jax.numpy as jnp
from jax.experimental import pallas as pl
from jax.experimental.pallas import tpu as pltpu


def _round_up(x: int, m: int) -> int:
    return (x + m - 1) // m * m


def lstm_cell_kernel(x_ref, h_ref, c_ref, w_ref, u_ref, b_ref,
                     h_out_ref, c_out_ref, *, hp: int):
    # x: (tB, Ip) bf16, h: (tB, Hp) bf16, c: (tB, Hp) f32
    # w: (Ip, 4*Hp) bf16, u: (Hp, 4*Hp) bf16, b: (1, 4*Hp) f32
    # Two lane-dense MXU matmuls, f32 accumulation, single bias broadcast.
    preact = (jnp.dot(x_ref[...], w_ref[...], preferred_element_type=jnp.float32)
              + jnp.dot(h_ref[...], u_ref[...], preferred_element_type=jnp.float32)
              + b_ref[...])

    # Static 128-aligned lane slices of the fused pre-activation.
    ig = jax.nn.sigmoid(preact[:, 0 * hp:1 * hp])
    fg = jax.nn.sigmoid(preact[:, 1 * hp:2 * hp])
    cc = jnp.tanh(preact[:, 2 * hp:3 * hp])
    og = jax.nn.sigmoid(preact[:, 3 * hp:4 * hp])

    c_new = fg * c_ref[...] + ig * cc
    h_new = og * jnp.tanh(c_new)

    c_out_ref[...] = c_new.astype(c_out_ref.dtype)
    h_out_ref[...] = h_new.astype(h_out_ref.dtype)


def _pack_fused(mats, rows, rows_pad, h, hp, dtype):
    """Stack 4 per-gate [rows, h] matrices into a padded [rows_pad, 4*hp] slab
    so that gate g lives in lanes [g*hp, g*hp + h)."""
    stacked = jnp.stack(mats, axis=1).astype(dtype)          # [rows, 4, h]
    packed = jnp.zeros((rows_pad, 4, hp), dtype)
    packed = packed.at[:rows, :, :h].set(stacked)
    return packed.reshape(rows_pad, 4 * hp)


def lstm_cell(x, h_prev, c_prev, params):
    """Single LSTM cell step: (h, c) = LSTMCell(x, (h_prev, c_prev))."""
    B, I = x.shape
    H = h_prev.shape[1]
    out_dtype = x.dtype

    # Padded, hardware-friendly shapes.
    Hp = _round_up(H, 128)          # lane-dense hidden dim
    Ip = _round_up(I, 16)           # bf16 sublane pack on the contraction dim
    Bp0 = _round_up(B, 16)          # bf16 sublane pack on the batch dim
    if Bp0 <= 256:
        tB, Bp = Bp0, Bp0
    else:
        tB, Bp = 256, _round_up(B, 256)

    # ---- Fuse + pad weights / biases (wrapper-side, traced once under jit).
    w_fused = _pack_fused([params["W" + g] for g in ("i", "f", "g", "o")],
                          I, Ip, H, Hp, jnp.bfloat16)                  # [Ip, 4Hp]
    u_fused = _pack_fused([params["U" + g] for g in ("i", "f", "g", "o")],
                          H, Hp, H, Hp, jnp.bfloat16)                  # [Hp, 4Hp]
    b_stacked = jnp.stack([params["b" + g] for g in ("i", "f", "g", "o")],
                          axis=0).astype(jnp.float32)                  # [4, H]
    b_fused = jnp.zeros((1, 4, Hp), jnp.float32)
    b_fused = b_fused.at[0, :, :H].set(b_stacked).reshape(1, 4 * Hp)   # [1, 4Hp]

    # ---- Pad activations; matmul inputs in bf16, elementwise state in f32.
    x_p = jnp.zeros((Bp, Ip), jnp.bfloat16).at[:B, :I].set(x.astype(jnp.bfloat16))
    h_p = jnp.zeros((Bp, Hp), jnp.bfloat16).at[:B, :H].set(
        h_prev.astype(jnp.bfloat16))
    c_p = jnp.zeros((Bp, Hp), jnp.float32).at[:B, :H].set(
        c_prev.astype(jnp.float32))

    grid = (Bp // tB,)

    # Rough VMEM budget (weights resident + double-buffered activation blocks).
    vmem_bytes = (2 * (w_fused.size + u_fused.size)            # bf16 weights
                  + 4 * b_fused.size
                  + 2 * 2 * (tB * Ip + tB * Hp)                # x, h blocks (dbl-buf)
                  + 2 * 4 * (3 * tB * Hp)                      # c in + h/c out
                  + 4 * (tB * 4 * Hp) * 3)                     # preact/gate temps
    vmem_limit = int(min(max(2 * vmem_bytes, 4 << 20), 100 << 20))

    cost = pl.CostEstimate(
        flops=2 * Bp * (Ip + Hp) * 4 * Hp,
        transcendentals=5 * Bp * Hp,
        bytes_accessed=(x_p.size * 2 + h_p.size * 2 + c_p.size * 4
                        + w_fused.size * 2 + u_fused.size * 2 + b_fused.size * 4
                        + 2 * Bp * Hp * jnp.dtype(out_dtype).itemsize),
    )

    kernel = functools.partial(lstm_cell_kernel, hp=Hp)

    h_pad, c_pad = pl.pallas_call(
        kernel,
        out_shape=(jax.ShapeDtypeStruct((Bp, Hp), out_dtype),
                   jax.ShapeDtypeStruct((Bp, Hp), out_dtype)),
        grid=grid,
        in_specs=[
            pl.BlockSpec((tB, Ip), lambda i: (i, 0)),        # x block
            pl.BlockSpec((tB, Hp), lambda i: (i, 0)),        # h block
            pl.BlockSpec((tB, Hp), lambda i: (i, 0)),        # c block
            pl.BlockSpec((Ip, 4 * Hp), lambda i: (0, 0)),    # W (resident)
            pl.BlockSpec((Hp, 4 * Hp), lambda i: (0, 0)),    # U (resident)
            pl.BlockSpec((1, 4 * Hp), lambda i: (0, 0)),     # b (resident)
        ],
        out_specs=(pl.BlockSpec((tB, Hp), lambda i: (i, 0)),
                   pl.BlockSpec((tB, Hp), lambda i: (i, 0))),
        compiler_params=pltpu.CompilerParams(
            dimension_semantics=("parallel",),
            vmem_limit_bytes=vmem_limit),
        cost_estimate=cost,
    )(x_p, h_p, c_p, w_fused, u_fused, b_fused)

    # Strip the padding back to the module's [B, H] outputs.
    return h_pad[:B, :H], c_pad[:B, :H]


def init_lstm_params(key, input_size, hidden_size, dtype=jnp.float32):
    """Matches the PyTorch module's init_weights: xavier_normal_ for 2-D
    weights, zeros for every 1-D bias (including bi)."""
    params = {}
    keys = jax.random.split(key, 8)
    k_idx = 0
    std_w = (2.0 / (input_size + hidden_size)) ** 0.5
    std_u = (2.0 / (hidden_size + hidden_size)) ** 0.5
    for g in ("i", "f", "g", "o"):
        params["W" + g] = (std_w * jax.random.normal(
            keys[k_idx], (input_size, hidden_size))).astype(dtype)
        k_idx += 1
        params["U" + g] = (std_u * jax.random.normal(
            keys[k_idx], (hidden_size, hidden_size))).astype(dtype)
        k_idx += 1
        params["b" + g] = jnp.zeros((hidden_size,), dtype)
    return params


def lstm_cell_ref(x, h_prev, c_prev, p):
    """Pure-JAX f32 reference for verification."""
    def gate(Wn, Un, bn, act):
        return act(x @ p[Wn] + h_prev @ p[Un] + p[bn])
    ig = gate("Wi", "Ui", "bi", jax.nn.sigmoid)
    fg = gate("Wf", "Uf", "bf", jax.nn.sigmoid)
    cc = gate("Wg", "Ug", "bg", jnp.tanh)
    og = gate("Wo", "Uo", "bo", jax.nn.sigmoid)
    c = fg * c_prev + ig * cc
    h = og * jnp.tanh(c)
    return h, c


if __name__ == "__main__":
    key = jax.random.PRNGKey(0)
    k_x, k_h, k_c, k_p = jax.random.split(key, 4)

    batch, input_size, hidden_size = 8, 16, 32
    x = jax.random.normal(k_x, (batch, input_size), jnp.float32)
    h_prev = jax.random.normal(k_h, (batch, hidden_size), jnp.float32)
    c_prev = jax.random.normal(k_c, (batch, hidden_size), jnp.float32)

    params = init_lstm_params(k_p, input_size, hidden_size)

    h_new, c_new = jax.jit(lstm_cell)(x, h_prev, c_prev, params)
    jax.block_until_ready((h_new, c_new))

    h_ref, c_ref = lstm_cell_ref(x, h_prev, c_prev, params)
    # bf16 matmuls with f32 accumulation -> looser tolerance than pure f32.
    assert h_new.shape == (batch, hidden_size)
    assert c_new.shape == (batch, hidden_size)
    assert jnp.allclose(h_new, h_ref, atol=3e-2, rtol=3e-2)
    assert jnp.allclose(c_new, c_ref, atol=3e-2, rtol=3e-2)

    print("KERNEL_OK")
</pallas_src>

<mosaic_0001>
module attributes {stable_mosaic.version = 11 : i64} {
  func.func @lstm_cell_kernel(%arg0: i32, %arg1: memref<16x16xbf16, #tpu.memory_space<vmem>>, %arg2: memref<16x128xbf16, #tpu.memory_space<vmem>>, %arg3: memref<16x128xf32, #tpu.memory_space<vmem>>, %arg4: memref<16x512xbf16, #tpu.memory_space<vmem>>, %arg5: memref<128x512xbf16, #tpu.memory_space<vmem>>, %arg6: memref<1x512xf32, #tpu.memory_space<vmem>>, %arg7: memref<16x128xf32, #tpu.memory_space<vmem>>, %arg8: memref<16x128xf32, #tpu.memory_space<vmem>>) attributes {dimension_semantics = [#tpu.dimension_semantics<parallel>], iteration_bounds = array<i64: 1>, scalar_prefetch = 0 : i64, scratch_operands = 0 : i64, tpu.core_type = #tpu.core_type<tc>, window_params = [{transform_indices = @transform_0, window_bounds = array<i64: 16, 16>}, {transform_indices = @transform_1, window_bounds = array<i64: 16, 128>}, {transform_indices = @transform_2, window_bounds = array<i64: 16, 128>}, {pipeline_mode = #tpu.pipeline_mode<synchronous>, transform_indices = @transform_3, window_bounds = array<i64: 16, 512>}, {pipeline_mode = #tpu.pipeline_mode<synchronous>, transform_indices = @transform_4, window_bounds = array<i64: 128, 512>}, {pipeline_mode = #tpu.pipeline_mode<synchronous>, transform_indices = @transform_5, window_bounds = array<i64: 1, 512>}, {transform_indices = @transform_6, window_bounds = array<i64: 16, 128>}, {transform_indices = @transform_7, window_bounds = array<i64: 16, 128>}]} {
    %c0 = arith.constant 0 : index
    %c0_0 = arith.constant 0 : index
    %0 = vector.load %arg1[%c0, %c0_0] : memref<16x16xbf16, #tpu.memory_space<vmem>>, vector<16x16xbf16>
    %c0_1 = arith.constant 0 : index
    %c0_2 = arith.constant 0 : index
    %1 = vector.load %arg4[%c0_1, %c0_2] : memref<16x512xbf16, #tpu.memory_space<vmem>>, vector<16x512xbf16>
    %cst = arith.constant dense<0.000000e+00> : vector<16x512xf32>
    %2 = tpu.matmul %0, %1, %cst {dimension_numbers = #tpu.dot_dimension_numbers<[1], [0], [0], [1], [0, 0, 1, 1], [], []>} : vector<16x16xbf16>, vector<16x512xbf16>, vector<16x512xf32> -> vector<16x512xf32>
    %c0_3 = arith.constant 0 : index
    %c0_4 = arith.constant 0 : index
    %3 = vector.load %arg2[%c0_3, %c0_4] : memref<16x128xbf16, #tpu.memory_space<vmem>>, vector<16x128xbf16>
    %c0_5 = arith.constant 0 : index
    %c0_6 = arith.constant 0 : index
    %4 = vector.load %arg5[%c0_5, %c0_6] : memref<128x512xbf16, #tpu.memory_space<vmem>>, vector<128x512xbf16>
    %cst_7 = arith.constant dense<0.000000e+00> : vector<16x512xf32>
    %5 = tpu.matmul %3, %4, %cst_7 {dimension_numbers = #tpu.dot_dimension_numbers<[1], [0], [0], [1], [0, 0, 1, 1], [], []>} : vector<16x128xbf16>, vector<128x512xbf16>, vector<16x512xf32> -> vector<16x512xf32>
    %6 = arith.addf %2, %5 : vector<16x512xf32>
    %c0_8 = arith.constant 0 : index
    %c0_9 = arith.constant 0 : index
    %7 = vector.load %arg6[%c0_8, %c0_9] : memref<1x512xf32, #tpu.memory_space<vmem>>, vector<1x512xf32>
    %8 = vector.broadcast %7 : vector<1x512xf32> to vector<16x512xf32>
    %9 = arith.addf %6, %8 : vector<16x512xf32>
    %10 = vector.extract_strided_slice %9 {offsets = [0, 0], sizes = [16, 128], strides = [1, 1]} : vector<16x512xf32> to vector<16x128xf32>
    %11 = arith.negf %10 : vector<16x128xf32>
    %12 = math.exp %11 : vector<16x128xf32>
    %cst_10 = arith.constant 1.000000e+00 : f32
    %13 = vector.broadcast %cst_10 : f32 to vector<16x128xf32>
    %14 = arith.addf %13, %12 : vector<16x128xf32>
    %15 = arith.divf %13, %14 : vector<16x128xf32>
    %16 = vector.extract_strided_slice %9 {offsets = [0, 128], sizes = [16, 128], strides = [1, 1]} : vector<16x512xf32> to vector<16x128xf32>
    %17 = arith.negf %16 : vector<16x128xf32>
    %18 = math.exp %17 : vector<16x128xf32>
    %cst_11 = arith.constant 1.000000e+00 : f32
    %19 = vector.broadcast %cst_11 : f32 to vector<16x128xf32>
    %20 = arith.addf %19, %18 : vector<16x128xf32>
    %21 = arith.divf %19, %20 : vector<16x128xf32>
    %22 = vector.extract_strided_slice %9 {offsets = [0, 256], sizes = [16, 128], strides = [1, 1]} : vector<16x512xf32> to vector<16x128xf32>
    %23 = math.tanh %22 : vector<16x128xf32>
    %24 = vector.extract_strided_slice %9 {offsets = [0, 384], sizes = [16, 128], strides = [1, 1]} : vector<16x512xf32> to vector<16x128xf32>
    %25 = arith.negf %24 : vector<16x128xf32>
    %26 = math.exp %25 : vector<16x128xf32>
    %cst_12 = arith.constant 1.000000e+00 : f32
    %27 = vector.broadcast %cst_12 : f32 to vector<16x128xf32>
    %28 = arith.addf %27, %26 : vector<16x128xf32>
    %29 = arith.divf %27, %28 : vector<16x128xf32>
    %c0_13 = arith.constant 0 : index
    %c0_14 = arith.constant 0 : index
    %30 = vector.load %arg3[%c0_13, %c0_14] : memref<16x128xf32, #tpu.memory_space<vmem>>, vector<16x128xf32>
    %31 = arith.mulf %21, %30 : vector<16x128xf32>
    %32 = arith.mulf %15, %23 : vector<16x128xf32>
    %33 = arith.addf %31, %32 : vector<16x128xf32>
    %34 = math.tanh %33 : vector<16x128xf32>
    %35 = arith.mulf %29, %34 : vector<16x128xf32>
    %c0_15 = arith.constant 0 : index
    %c0_16 = arith.constant 0 : index
    %36 = vector.load %arg8[%c0_15, %c0_16] : memref<16x128xf32, #tpu.memory_space<vmem>>, vector<16x128xf32>
    tpu.vector_store %arg8[%c0_15, %c0_16], %33 {strides = array<i32>} : memref<16x128xf32, #tpu.memory_space<vmem>>, vector<16x128xf32>,
    %c0_17 = arith.constant 0 : index
    %c0_18 = arith.constant 0 : index
    %37 = vector.load %arg7[%c0_17, %c0_18] : memref<16x128xf32, #tpu.memory_space<vmem>>, vector<16x128xf32>
    tpu.vector_store %arg7[%c0_17, %c0_18], %35 {strides = array<i32>} : memref<16x128xf32, #tpu.memory_space<vmem>>, vector<16x128xf32>,
    return
  }
  func.func @transform_0(%arg0: i32) -> (i32, i32) {
    %c0_i32 = arith.constant 0 : i32
    %c0_i32_0 = arith.constant 0 : i32
    return %arg0, %c0_i32 : i32, i32
  }
  func.func @transform_1(%arg0: i32) -> (i32, i32) {
    %c0_i32 = arith.constant 0 : i32
    %c0_i32_0 = arith.constant 0 : i32
    return %arg0, %c0_i32 : i32, i32
  }
  func.func @transform_2(%arg0: i32) -> (i32, i32) {
    %c0_i32 = arith.constant 0 : i32
    %c0_i32_0 = arith.constant 0 : i32
    return %arg0, %c0_i32 : i32, i32
  }
  func.func @transform_3(%arg0: i32) -> (i32, i32) {
    %c0_i32 = arith.constant 0 : i32
    %c0_i32_0 = arith.constant 0 : i32
    %c0_i32_1 = arith.constant 0 : i32
    return %c0_i32, %c0_i32_0 : i32, i32
  }
  func.func @transform_4(%arg0: i32) -> (i32, i32) {
    %c0_i32 = arith.constant 0 : i32
    %c0_i32_0 = arith.constant 0 : i32
    %c0_i32_1 = arith.constant 0 : i32
    return %c0_i32, %c0_i32_0 : i32, i32
  }
  func.func @transform_5(%arg0: i32) -> (i32, i32) {
    %c0_i32 = arith.constant 0 : i32
    %c0_i32_0 = arith.constant 0 : i32
    %c0_i32_1 = arith.constant 0 : i32
    return %c0_i32, %c0_i32_0 : i32, i32
  }
  func.func @transform_6(%arg0: i32) -> (i32, i32) {
    %c0_i32 = arith.constant 0 : i32
    %c0_i32_0 = arith.constant 0 : i32
    return %arg0, %c0_i32 : i32, i32
  }
  func.func @transform_7(%arg0: i32) -> (i32, i32) {
    %c0_i32 = arith.constant 0 : i32
    %c0_i32_0 = arith.constant 0 : i32
    return %arg0, %c0_i32 : i32, i32
  }
}

</mosaic_0001>

<llo_original>
// kernel: lstm_cell.1
$region0: #{lstm_cell.1}
  #allocation0 [shape = 'u32[]', space=smem, size = 0x4, offset = 0x4, fixed_abs, tag = 'smem constant byte address 0x4 - core index']
  #allocation1 [shape = 'u32[72,128]{1,0:T(1,128)}', space=vmem, size = 0x9000, scoped, tag = 'internal scratch']
  %s0 = inlined_call_operand.vmem [shape: bf16[16,16], index: 0, kind: input, shape index: {}]
  %s1 = inlined_call_operand.vmem [shape: bf16[16,128], index: 1, kind: input, shape index: {}]
  %s2 = inlined_call_operand.vmem [shape: f32[16,128], index: 2, kind: input, shape index: {}]
  %s3 = inlined_call_operand.vmem [shape: bf16[16,512], index: 3, kind: input, shape index: {}]
  %s4 = inlined_call_operand.vmem [shape: bf16[128,512], index: 4, kind: input, shape index: {}]
  %s5 = inlined_call_operand.vmem [shape: f32[1,512], index: 5, kind: input, shape index: {}]
  %s6 = inlined_call_operand.vmem [shape: f32[16,128], index: 6, kind: output, shape index: {0}]
  %s7 = inlined_call_operand.vmem [shape: f32[16,128], index: 7, kind: output, shape index: {1}]
  %8 = xla_tuple %s6, %s7
  %s9 = sld [smem:[#allocation0]]
  $region42: #{lstm_cell.1} parent=0
    _
  %s11 = ssub.s32 1, %s9
  %s12 = scalar_select 0, %s11, %s9
  // Predicated region
  $region2: #{lstm_cell.1} parent=0 // pred_check
    _
  $region3: #{lstm_cell.1} parent=0 // pred_check_branch
    %14 = sbr.rel (0) target = $region5
  $region4: #{lstm_cell.1} parent=0 // pred_region
    _
  $region5: #{lstm_cell.1} parent=0 // pred_fallthru
    _
  // Predicated region
  $region6: #{lstm_cell.1} parent=0 // pred_check
    _
  $region7: #{lstm_cell.1} parent=0 // pred_check_branch
    %16 = sbr.rel (0) target = $region9
  $region8: #{lstm_cell.1} parent=0 // pred_region
    _
  $region9: #{lstm_cell.1} parent=0 // pred_fallthru
    _
  // Predicated region
  $region10: #{lstm_cell.1} parent=0 // pred_check
    _
  $region11: #{lstm_cell.1} parent=0 // pred_check_branch
    %18 = sbr.rel (0) target = $region13
  $region12: #{lstm_cell.1} parent=0 // pred_region
    _
  $region13: #{lstm_cell.1} parent=0 // pred_fallthru
    _
  // Predicated region
  $region14: #{lstm_cell.1} parent=0 // pred_check
    _
  $region15: #{lstm_cell.1} parent=0 // pred_check_branch
    %20 = sbr.rel (0) target = $region17
  $region16: #{lstm_cell.1} parent=0 // pred_region
    _
  $region17: #{lstm_cell.1} parent=0 // pred_fallthru
    _
  // Predicated region
  $region18: #{lstm_cell.1} parent=0 // pred_check
    _
  $region19: #{lstm_cell.1} parent=0 // pred_check_branch
    %22 = sbr.rel (0) target = $region21
  $region20: #{lstm_cell.1} parent=0 // pred_region
    _
  $region21: #{lstm_cell.1} parent=0 // pred_fallthru
    _
  // Predicated region
  $region22: #{lstm_cell.1} parent=0 // pred_check
    _
  $region23: #{lstm_cell.1} parent=0 // pred_check_branch
    %24 = sbr.rel (0) target = $region25
  $region24: #{lstm_cell.1} parent=0 // pred_region
    _
  $region25: #{lstm_cell.1} parent=0 // pred_fallthru
    _
  %v26 = vld [vmem:[%s0] sm:$0xf]
  %v27 = vld [vmem:[%s0 + $0x4] sm:$0xf]
  %v28 = vld [vmem:[%s3] sm:$0xff]
  %v29 = vld [vmem:[%s3 + $0x8] sm:$0xff]
  %v30 = vld [vmem:[%s3 + $0x10] sm:$0xff]
  %v31 = vld [vmem:[%s3 + $0x18] sm:$0xff]
  %v32 = vld [vmem:[%s1] sm:$0xf]
  %v33 = vld [vmem:[%s1 + $0x4] sm:$0xf]
  %v34 = vld [vmem:[%s4] sm:$0xff]
  %v35 = vld [vmem:[%s4 + $0x8] sm:$0xff]
  %v36 = vld [vmem:[%s4 + $0x10] sm:$0xff]
  %v37 = vld [vmem:[%s4 + $0x18] sm:$0xff]
  %v38 = vld [vmem:[%s4 + $0x20] sm:$0xff]
  %v39 = vld [vmem:[%s4 + $0x28] sm:$0xff]
  %v40 = vld [vmem:[%s4 + $0x30] sm:$0xff]
  %v41 = vld [vmem:[%s4 + $0x38] sm:$0xff]
  %v42 = vld [vmem:[%s4 + $0x40] sm:$0xff]
  %v43 = vld [vmem:[%s4 + $0x48] sm:$0xff]
  %v44 = vld [vmem:[%s4 + $0x50] sm:$0xff]
  %v45 = vld [vmem:[%s4 + $0x58] sm:$0xff]
  %v46 = vld [vmem:[%s4 + $0x60] sm:$0xff]
  %v47 = vld [vmem:[%s4 + $0x68] sm:$0xff]
  %v48 = vld [vmem:[%s4 + $0x70] sm:$0xff]
  %v49 = vld [vmem:[%s4 + $0x78] sm:$0xff]
  %v50 = vld [vmem:[%s4 + $0x80] sm:$0xff]
  %v51 = vld [vmem:[%s4 + $0x88] sm:$0xff]
  %v52 = vld [vmem:[%s4 + $0x90] sm:$0xff]
  %v53 = vld [vmem:[%s4 + $0x98] sm:$0xff]
  %v54 = vld [vmem:[%s4 + $0xa0] sm:$0xff]
  %v55 = vld [vmem:[%s4 + $0xa8] sm:$0xff]
  %v56 = vld [vmem:[%s4 + $0xb0] sm:$0xff]
  %v57 = vld [vmem:[%s4 + $0xb8] sm:$0xff]
  %v58 = vld [vmem:[%s4 + $0xc0] sm:$0xff]
  %v59 = vld [vmem:[%s4 + $0xc8] sm:$0xff]
  %v60 = vld [vmem:[%s4 + $0xd0] sm:$0xff]
  %v61 = vld [vmem:[%s4 + $0xd8] sm:$0xff]
  %v62 = vld [vmem:[%s4 + $0xe0] sm:$0xff]
  %v63 = vld [vmem:[%s4 + $0xe8] sm:$0xff]
  %v64 = vld [vmem:[%s4 + $0xf0] sm:$0xff]
  %v65 = vld [vmem:[%s4 + $0xf8] sm:$0xff]
  %v68 = vunpack.c.l.b16 %v32
  %v69 = vunpack.c.l.b16 %v33
  %v70 = vpack.c.b16 %v69, %v68
  %v104 = vunpack.c.l.b16 %v34
  %v105 = vunpack.c.h.b16 %v34
  %v106 = vunpack.c.l.b16 %v35
  %v107 = vunpack.c.h.b16 %v35
  %v108 = vunpack.c.l.b16 %v36
  %v109 = vunpack.c.h.b16 %v36
  %v110 = vunpack.c.l.b16 %v37
  %v111 = vunpack.c.h.b16 %v37
  %v112 = vunpack.c.l.b16 %v38
  %v113 = vunpack.c.h.b16 %v38
  %v114 = vunpack.c.l.b16 %v39
  %v115 = vunpack.c.h.b16 %v39
  %v116 = vunpack.c.l.b16 %v40
  %v117 = vunpack.c.h.b16 %v40
  %v118 = vunpack.c.l.b16 %v41
  %v119 = vunpack.c.h.b16 %v41
  %v120 = vunpack.c.l.b16 %v42
  %v121 = vunpack.c.h.b16 %v42
  %v122 = vunpack.c.l.b16 %v43
  %v123 = vunpack.c.h.b16 %v43
  %v124 = vunpack.c.l.b16 %v44
  %v125 = vunpack.c.h.b16 %v44
  %v126 = vunpack.c.l.b16 %v45
  %v127 = vunpack.c.h.b16 %v45
  %v128 = vunpack.c.l.b16 %v46
  %v129 = vunpack.c.h.b16 %v46
  %v130 = vunpack.c.l.b16 %v47
  %v131 = vunpack.c.h.b16 %v47
  %v132 = vunpack.c.l.b16 %v48
  %v133 = vunpack.c.h.b16 %v48
  %v134 = vunpack.c.l.b16 %v49
  %v135 = vunpack.c.h.b16 %v49
  %v136 = vunpack.c.l.b16 %v50
  %v137 = vunpack.c.h.b16 %v50
  %v138 = vunpack.c.l.b16 %v51
  %v139 = vunpack.c.h.b16 %v51
  %v140 = vunpack.c.l.b16 %v52
  %v141 = vunpack.c.h.b16 %v52
  %v142 = vunpack.c.l.b16 %v53
  %v143 = vunpack.c.h.b16 %v53
  %v144 = vunpack.c.l.b16 %v54
  %v145 = vunpack.c.h.b16 %v54
  %v146 = vunpack.c.l.b16 %v55
  %v147 = vunpack.c.h.b16 %v55
  %v148 = vunpack.c.l.b16 %v56
  %v149 = vunpack.c.h.b16 %v56
  %v150 = vunpack.c.l.b16 %v57
  %v151 = vunpack.c.h.b16 %v57
  %v152 = vunpack.c.l.b16 %v58
  %v153 = vunpack.c.h.b16 %v58
  %v154 = vunpack.c.l.b16 %v59
  %v155 = vunpack.c.h.b16 %v59
  %v156 = vunpack.c.l.b16 %v60
  %v157 = vunpack.c.h.b16 %v60
  %v158 = vunpack.c.l.b16 %v61
  %v159 = vunpack.c.h.b16 %v61
  %v160 = vunpack.c.l.b16 %v62
  %v161 = vunpack.c.h.b16 %v62
  %v162 = vunpack.c.l.b16 %v63
  %v163 = vunpack.c.h.b16 %v63
  %v164 = vunpack.c.l.b16 %v64
  %v165 = vunpack.c.h.b16 %v64
  %v166 = vunpack.c.l.b16 %v65
  %v167 = vunpack.c.h.b16 %v65
  %v168 = vpack.c.b16 %v108, %v104
  %v169 = vpack.c.b16 %v109, %v105
  %v170 = vpack.c.b16 %v110, %v106
  %v171 = vpack.c.b16 %v111, %v107
  %v172 = vpack.c.b16 %v116, %v112
  %v173 = vpack.c.b16 %v117, %v113
  %v174 = vpack.c.b16 %v118, %v114
  %v175 = vpack.c.b16 %v119, %v115
  %v176 = vpack.c.b16 %v124, %v120
  %v177 = vpack.c.b16 %v125, %v121
  %v178 = vpack.c.b16 %v126, %v122
  %v179 = vpack.c.b16 %v127, %v123
  %v180 = vpack.c.b16 %v132, %v128
  %v181 = vpack.c.b16 %v133, %v129
  %v182 = vpack.c.b16 %v134, %v130
  %v183 = vpack.c.b16 %v135, %v131
  %v184 = vpack.c.b16 %v140, %v136
  %v185 = vpack.c.b16 %v141, %v137
  %v186 = vpack.c.b16 %v142, %v138
  %v187 = vpack.c.b16 %v143, %v139
  %v188 = vpack.c.b16 %v148, %v144
  %v189 = vpack.c.b16 %v149, %v145
  %v190 = vpack.c.b16 %v150, %v146
  %v191 = vpack.c.b16 %v151, %v147
  %v192 = vpack.c.b16 %v156, %v152
  %v193 = vpack.c.b16 %v157, %v153
  %v194 = vpack.c.b16 %v158, %v154
  %v195 = vpack.c.b16 %v159, %v155
  %v196 = vpack.c.b16 %v164, %v160
  %v197 = vpack.c.b16 %v165, %v161
  %v198 = vpack.c.b16 %v166, %v162
  %v199 = vpack.c.b16 %v167, %v163
  %232 = vmatpush.bf16.msra.mxu0 %v196
  %233 = vmatpush.bf16.msra.mxu0 %v192
  %234 = vmatpush.bf16.msra.mxu0 %v188
  %235 = vmatpush.bf16.msra.mxu0 %v184
  %236 = vmatpush.bf16.msra.mxu0 %v180
  %237 = vmatpush.bf16.msra.mxu0 %v176
  %238 = vmatpush.bf16.msra.mxu0 %v172
  %239 = vmatpush.bf16.msra.mxu0 %v168
  %240 = vmatmul.bf16.gmra.mxu0 %v70
  %v241 = vpop.f32.mrf.mxu0
  %v242 = vadd.f32 0.0, %v241
  %v243 = vpop.f32.mrf.mxu0
  %v244 = vadd.f32 0.0, %v243
  %245 = vdwg.mxu0
  %246 = vmatpush.bf16.msra.mxu0 %v197
  %247 = vmatpush.bf16.msra.mxu0 %v193
  %248 = vmatpush.bf16.msra.mxu0 %v189
  %249 = vmatpush.bf16.msra.mxu0 %v185
  %250 = vmatpush.bf16.msra.mxu0 %v181
  %251 = vmatpush.bf16.msra.mxu0 %v177
  %252 = vmatpush.bf16.msra.mxu0 %v173
  %253 = vmatpush.bf16.msra.mxu0 %v169
  %254 = vmatmul.bf16.gmra.mxu0 %v70
  %v255 = vpop.f32.mrf.mxu0
  %v256 = vadd.f32 0.0, %v255
  %v257 = vpop.f32.mrf.mxu0
  %v258 = vadd.f32 0.0, %v257
  %259 = vdwg.mxu0
  %260 = vmatpush.bf16.msra.mxu0 %v198
  %261 = vmatpush.bf16.msra.mxu0 %v194
  %262 = vmatpush.bf16.msra.mxu0 %v190
  %263 = vmatpush.bf16.msra.mxu0 %v186
  %264 = vmatpush.bf16.msra.mxu0 %v182
  %265 = vmatpush.bf16.msra.mxu0 %v178
  %266 = vmatpush.bf16.msra.mxu0 %v174
  %267 = vmatpush.bf16.msra.mxu0 %v170
  %268 = vmatmul.bf16.gmra.mxu0 %v70
  %v269 = vpop.f32.mrf.mxu0
  %v270 = vadd.f32 0.0, %v269
  %v271 = vpop.f32.mrf.mxu0
  %v272 = vadd.f32 0.0, %v271
  %273 = vdwg.mxu0
  %274 = vmatpush.bf16.msra.mxu0 %v199
  %275 = vmatpush.bf16.msra.mxu0 %v195
  %276 = vmatpush.bf16.msra.mxu0 %v191
  %277 = vmatpush.bf16.msra.mxu0 %v187
  %278 = vmatpush.bf16.msra.mxu0 %v183
  %279 = vmatpush.bf16.msra.mxu0 %v179
  %280 = vmatpush.bf16.msra.mxu0 %v175
  %281 = vmatpush.bf16.msra.mxu0 %v171
  %282 = vmatmul.bf16.gmra.mxu0 %v70
  %v283 = vpop.f32.mrf.mxu0
  %v284 = vadd.f32 0.0, %v283
  %v285 = vpop.f32.mrf.mxu0
  %v286 = vadd.f32 0.0, %v285
  %287 = vdwg.mxu0
  %v290 = vunpack.c.l.b16 %v26
  %v291 = vunpack.c.l.b16 %v27
  %v292 = vpack.c.b16 %v291, %v290
  %v297 = vunpack.c.l.b16 %v28
  %v298 = vunpack.c.h.b16 %v28
  %v299 = vunpack.c.l.b16 %v29
  %v300 = vunpack.c.h.b16 %v29
  %v301 = vunpack.c.l.b16 %v30
  %v302 = vunpack.c.h.b16 %v30
  %v303 = vunpack.c.l.b16 %v31
  %v304 = vunpack.c.h.b16 %v31
  %v305 = vpack.c.b16 %v301, %v297
  %v306 = vpack.c.b16 %v302, %v298
  %v307 = vpack.c.b16 %v303, %v299
  %v308 = vpack.c.b16 %v304, %v300
  %vm313 = vcmask 130048
  %v315 = vsel %vm313, %v292, 0
  %317 = vmatpush.bf16.msra.mxu0 0
  %318 = vmatpush.bf16.msra.mxu0 0
  %319 = vmatpush.bf16.msra.mxu0 0
  %320 = vmatpush.bf16.msra.mxu0 0
  %321 = vmatpush.bf16.msra.mxu0 0
  %322 = vmatpush.bf16.msra.mxu0 0
  %323 = vmatpush.bf16.msra.mxu0 0
  %324 = vmatpush.bf16.msra.mxu0 %v305
  %325 = vmatmul.bf16.gmra.mxu0 %v315
  %v326 = vpop.f32.mrf.mxu0
  %v327 = vadd.f32 %v242, %v326
  %v328 = vpop.f32.mrf.mxu0
  %v329 = vadd.f32 %v244, %v328
  %330 = vdwg.mxu0
  %331 = vmatpush.bf16.msra.mxu0 0
  %332 = vmatpush.bf16.msra.mxu0 0
  %333 = vmatpush.bf16.msra.mxu0 0
  %334 = vmatpush.bf16.msra.mxu0 0
  %335 = vmatpush.bf16.msra.mxu0 0
  %336 = vmatpush.bf16.msra.mxu0 0
  %337 = vmatpush.bf16.msra.mxu0 0
  %338 = vmatpush.bf16.msra.mxu0 %v306
  %339 = vmatmul.bf16.gmra.mxu0 %v315
  %v340 = vpop.f32.mrf.mxu0
  %v341 = vadd.f32 %v256, %v340
  %v342 = vpop.f32.mrf.mxu0
  %v343 = vadd.f32 %v258, %v342
  %344 = vdwg.mxu0
  %345 = vmatpush.bf16.msra.mxu0 0
  %346 = vmatpush.bf16.msra.mxu0 0
  %347 = vmatpush.bf16.msra.mxu0 0
  %348 = vmatpush.bf16.msra.mxu0 0
  %349 = vmatpush.bf16.msra.mxu0 0
  %350 = vmatpush.bf16.msra.mxu0 0
  %351 = vmatpush.bf16.msra.mxu0 0
  %352 = vmatpush.bf16.msra.mxu0 %v307
  %353 = vmatmul.bf16.gmra.mxu0 %v315
  %v354 = vpop.f32.mrf.mxu0
  %v355 = vadd.f32 %v270, %v354
  %v356 = vpop.f32.mrf.mxu0
  %v357 = vadd.f32 %v272, %v356
  %358 = vdwg.mxu0
  %359 = vmatpush.bf16.msra.mxu0 0
  %360 = vmatpush.bf16.msra.mxu0 0
  %361 = vmatpush.bf16.msra.mxu0 0
  %362 = vmatpush.bf16.msra.mxu0 0
  %363 = vmatpush.bf16.msra.mxu0 0
  %364 = vmatpush.bf16.msra.mxu0 0
  %365 = vmatpush.bf16.msra.mxu0 0
  %366 = vmatpush.bf16.msra.mxu0 %v308
  %367 = vmatmul.bf16.gmra.mxu0 %v315
  %v368 = vpop.f32.mrf.mxu0
  %v369 = vadd.f32 %v284, %v368
  %v370 = vpop.f32.mrf.mxu0
  %v371 = vadd.f32 %v286, %v370
  %372 = vdwg.mxu0
  %v373 = vld [vmem:[%s5] sm:$0xf]
  %v375 = vperm.slane %v373, 0
  %v376 = vperm.slane %v373, 1
  %v377 = vperm.slane %v373, 2
  %v378 = vperm.slane %v373, 3
  %v383 = vadd.f32 %v327, %v375
  %v384 = vadd.f32 %v341, %v376
  %v385 = vadd.f32 %v355, %v377
  %v386 = vadd.f32 %v369, %v378
  %v387 = vadd.f32 %v329, %v375
  %v388 = vadd.f32 %v343, %v376
  %v389 = vadd.f32 %v357, %v377
  %v390 = vadd.f32 %v371, %v378
  %v391 = vxor.u32 %v383, 2147483648
  %v392 = vxor.u32 %v387, 2147483648
  %v393 = vmul.f32 %v391, 1.442695
  %v394 = vpow.pop %v393
  %v395 = vmul.f32 %v392, 1.442695
  %v396 = vpow.pop %v395
  %v397 = vadd.f32 %v394, 1.0
  %v398 = vadd.f32 %v396, 1.0
  %v399 = vrcp.pop %v397
  %v400 = vmul.f32 %v397, %v399
  %v401 = vsub.f32 1.0, %v400
  %v402 = vmul.f32 %v399, %v401
  %v403 = vadd.f32 %v399, %v402
  %vm404 = vweird.f32 %v397
  %vm405 = vweird.f32 %v399
  %vm406 = vmor %vm404, %vm405
  %v407 = vsel %vm406, %v399, %v403
  %v408 = vand.u32 2147483647, %v397
  %vm409 = vcmp.eq.f32.partialorder %v408, 8.507059e+37
  %v410 = vand.u32 %v397, 2147483648
  %v411 = vor.u32 1.1754944e-38, %v410
  %v412 = vsel %vm409, %v411, %v407
  %v413 = vmul.f32 1.0, %v412
  %v414 = vrcp.pop %v398
  %v415 = vmul.f32 %v398, %v414
  %v416 = vsub.f32 1.0, %v415
  %v417 = vmul.f32 %v414, %v416
  %v418 = vadd.f32 %v414, %v417
  %vm419 = vweird.f32 %v398
  %vm420 = vweird.f32 %v414
  %vm421 = vmor %vm419, %vm420
  %v422 = vsel %vm421, %v414, %v418
  %v423 = vand.u32 2147483647, %v398
  %vm424 = vcmp.eq.f32.partialorder %v423, 8.507059e+37
  %v425 = vand.u32 %v398, 2147483648
  %v426 = vor.u32 1.1754944e-38, %v425
  %v427 = vsel %vm424, %v426, %v422
  %v428 = vmul.f32 1.0, %v427
  %v429 = vxor.u32 %v384, 2147483648
  %v430 = vxor.u32 %v388, 2147483648
  %v431 = vmul.f32 %v429, 1.442695
  %v432 = vpow.pop %v431
  %v433 = vmul.f32 %v430, 1.442695
  %v434 = vpow.pop %v433
  %v435 = vadd.f32 %v432, 1.0
  %v436 = vadd.f32 %v434, 1.0
  %v437 = vrcp.pop %v435
  %v438 = vmul.f32 %v435, %v437
  %v439 = vsub.f32 1.0, %v438
  %v440 = vmul.f32 %v437, %v439
  %v441 = vadd.f32 %v437, %v440
  %vm442 = vweird.f32 %v435
  %vm443 = vweird.f32 %v437
  %vm444 = vmor %vm442, %vm443
  %v445 = vsel %vm444, %v437, %v441
  %v446 = vand.u32 2147483647, %v435
  %vm447 = vcmp.eq.f32.partialorder %v446, 8.507059e+37
  %v448 = vand.u32 %v435, 2147483648
  %v449 = vor.u32 1.1754944e-38, %v448
  %v450 = vsel %vm447, %v449, %v445
  %v451 = vmul.f32 1.0, %v450
  %v452 = vrcp.pop %v436
  %v453 = vmul.f32 %v436, %v452
  %v454 = vsub.f32 1.0, %v453
  %v455 = vmul.f32 %v452, %v454
  %v456 = vadd.f32 %v452, %v455
  %vm457 = vweird.f32 %v436
  %vm458 = vweird.f32 %v452
  %vm459 = vmor %vm457, %vm458
  %v460 = vsel %vm459, %v452, %v456
  %v461 = vand.u32 2147483647, %v436
  %vm462 = vcmp.eq.f32.partialorder %v461, 8.507059e+37
  %v463 = vand.u32 %v436, 2147483648
  %v464 = vor.u32 1.1754944e-38, %v463
  %v465 = vsel %vm462, %v464, %v460
  %v466 = vmul.f32 1.0, %v465
  %v467 = vtanh.pop %v385
  %v468 = vtanh.pop %v389
  %v469 = vxor.u32 %v386, 2147483648
  %v470 = vxor.u32 %v390, 2147483648
  %v471 = vmul.f32 %v469, 1.442695
  %v472 = vpow.pop %v471
  %v473 = vmul.f32 %v470, 1.442695
  %v474 = vpow.pop %v473
  %v475 = vadd.f32 %v472, 1.0
  %v476 = vadd.f32 %v474, 1.0
  %v477 = vrcp.pop %v475
  %v478 = vmul.f32 %v475, %v477
  %v479 = vsub.f32 1.0, %v478
  %v480 = vmul.f32 %v477, %v479
  %v481 = vadd.f32 %v477, %v480
  %vm482 = vweird.f32 %v475
  %vm483 = vweird.f32 %v477
  %vm484 = vmor %vm482, %vm483
  %v485 = vsel %vm484, %v477, %v481
  %v486 = vand.u32 2147483647, %v475
  %vm487 = vcmp.eq.f32.partialorder %v486, 8.507059e+37
  %v488 = vand.u32 %v475, 2147483648
  %v489 = vor.u32 1.1754944e-38, %v488
  %v490 = vsel %vm487, %v489, %v485
  %v491 = vmul.f32 1.0, %v490
  %v492 = vrcp.pop %v476
  %v493 = vmul.f32 %v476, %v492
  %v494 = vsub.f32 1.0, %v493
  %v495 = vmul.f32 %v492, %v494
  %v496 = vadd.f32 %v492, %v495
  %vm497 = vweird.f32 %v476
  %vm498 = vweird.f32 %v492
  %vm499 = vmor %vm497, %vm498
  %v500 = vsel %vm499, %v492, %v496
  %v501 = vand.u32 2147483647, %v476
  %vm502 = vcmp.eq.f32.partialorder %v501, 8.507059e+37
  %v503 = vand.u32 %v476, 2147483648
  %v504 = vor.u32 1.1754944e-38, %v503
  %v505 = vsel %vm502, %v504, %v500
  %v506 = vmul.f32 1.0, %v505
  %v507 = vld [vmem:[%s2] sm:$0xff]
  %v508 = vld [vmem:[%s2 + $0x8] sm:$0xff]
  %v509 = vmul.f32 %v451, %v507
  %v510 = vmul.f32 %v466, %v508
  %v511 = vmul.f32 %v413, %v467
  %v512 = vmul.f32 %v428, %v468
  %v513 = vadd.f32 %v509, %v511
  %v514 = vadd.f32 %v510, %v512
  %v515 = vtanh.pop %v513
  %v516 = vtanh.pop %v514
  %v517 = vmul.f32 %v491, %v515
  %v518 = vmul.f32 %v506, %v516
  %519 = vst [vmem:[%s7] sm:$0xff] %v513
  %520 = vst [vmem:[%s7 + $0x8] sm:$0xff] %v514
  %521 = vst [vmem:[%s6] sm:$0xff] %v517
  %522 = vst [vmem:[%s6 + $0x8] sm:$0xff] %v518
  // Predicated region
  $region26: #{lstm_cell.1} parent=0 // pred_check
    _
  $region27: #{lstm_cell.1} parent=0 // pred_check_branch
    %524 = sbr.rel (0) target = $region29
  $region28: #{lstm_cell.1} parent=0 // pred_region
    _
  $region29: #{lstm_cell.1} parent=0 // pred_fallthru
    _
  // Predicated region
  $region30: #{lstm_cell.1} parent=0 // pred_check
    _
  $region31: #{lstm_cell.1} parent=0 // pred_check_branch
    %526 = sbr.rel (0) target = $region33
  $region32: #{lstm_cell.1} parent=0 // pred_region
    _
  $region33: #{lstm_cell.1} parent=0 // pred_fallthru
    _
  // Predicated region
  $region34: #{lstm_cell.1} parent=0 // pred_check
    _
  $region35: #{lstm_cell.1} parent=0 // pred_check_branch
    %528 = sbr.rel (0) target = $region37
  $region36: #{lstm_cell.1} parent=0 // pred_region
    _
  $region37: #{lstm_cell.1} parent=0 // pred_fallthru
    _
  // Predicated region
  $region38: #{lstm_cell.1} parent=0 // pred_check
    _
  $region39: #{lstm_cell.1} parent=0 // pred_check_branch
    %530 = sbr.rel (0) target = $region41
  $region40: #{lstm_cell.1} parent=0 // pred_region
    _
  $region41: #{lstm_cell.1} parent=0 // pred_fallthru
    _

</llo_original>
